<compile_context>
chip_gen: v6e
topology: v6e:2x2x1
jax: 0.10.0
libtpu: 0.0.40
codegen_flags: <defaults>
</compile_context>

<pallas_src>
import jax
import jax.numpy as jnp
from jax import lax
from jax.experimental import pallas as pl
from jax.experimental.pallas import tpu as pltpu

_LANE = 128
_SUBLANE = 8
_MAX_TILE_B = 2048   # rows per grid step for very large batches
_SPLIT_B = 256       # above this, use >=2 grid steps (v7x has 2 TensorCores)


def _round_up(n, m):
    return ((n + m - 1) // m) * m


def _ppo_kernel(x_ref, w1_ref, b1_ref, w2_ref, b2_ref, wh_ref, bh_ref, out_ref):
    """One batch tile: shared MLP (Linear->ReLU->Linear->ReLU) + fused heads.

    x_ref : [TB, obs_dim]        f32 (cast to bf16 in-kernel)
    w1_ref: [obs_dim, hidden]    bf16   (resident across grid steps)
    w2_ref: [hidden, hidden]     bf16
    wh_ref: [head_rows, hidden]  bf16   fused+transposed head (mean rows, then value row)
    b*_ref: f32 biases
    out_ref:[head_rows, TB]      f32    lane-dense transposed head output
    """
    x = x_ref[...].astype(w1_ref.dtype)

    # Layer 1: bf16 matmul on MXU, f32 accumulate, f32 bias + ReLU on VPU.
    h1 = jnp.dot(x, w1_ref[...], preferred_element_type=jnp.float32) + b1_ref[...]
    h1 = jnp.maximum(h1, 0.0)

    # Layer 2.
    h2 = jnp.dot(h1.astype(w2_ref.dtype), w2_ref[...],
                 preferred_element_type=jnp.float32) + b2_ref[...]
    h2 = jnp.maximum(h2, 0.0)

    # Fused, transposed head:  wh [head_rows, hidden] x h2^T [hidden, TB]
    # -> [head_rows, TB]  (batch on the lane axis -> tiny lane-dense store).
    head = lax.dot_general(
        wh_ref[...], h2.astype(wh_ref.dtype),
        dimension_numbers=(((1,), (1,)), ((), ())),
        preferred_element_type=jnp.float32)
    out_ref[...] = head + bh_ref[...]


def pack_params(params, matmul_dtype=jnp.bfloat16):
    """One-time packing of weights into kernel-ready layouts (cache the result)."""
    hidden = params["w1"].shape[1]
    act_dim = params["wm"].shape[1]
    head_rows = _round_up(act_dim + 1, _SUBLANE)

    w1 = params["w1"].astype(matmul_dtype)                      # [obs_dim, hidden]
    w2 = params["w2"].astype(matmul_dtype)                      # [hidden, hidden]
    b1 = params["b1"].reshape(1, hidden).astype(jnp.float32)
    b2 = params["b2"].reshape(1, hidden).astype(jnp.float32)

    # Fused + transposed head weight: rows [0:act_dim] = policy_mean^T,
    # row act_dim = value_head^T, remaining rows zero (sublane padding).
    wh = jnp.zeros((head_rows, hidden), matmul_dtype)
    wh = wh.at[:act_dim, :].set(params["wm"].T.astype(matmul_dtype))
    wh = wh.at[act_dim, :].set(params["wv"][:, 0].astype(matmul_dtype))

    bh = jnp.zeros((head_rows, 1), jnp.float32)
    bh = bh.at[:act_dim, 0].set(params["bm"].reshape(-1).astype(jnp.float32))
    bh = bh.at[act_dim, 0].set(params["bv"].reshape(-1)[0].astype(jnp.float32))

    # std = exp(logstd) is batch-independent -> computed once here.
    std = jnp.exp(params["logstd"].reshape(1, -1)).astype(jnp.float32)

    return dict(w1=w1, b1=b1, w2=w2, b2=b2, wh=wh, bh=bh, std=std,
                hidden=hidden, act_dim=act_dim, head_rows=head_rows)


def ppo_actor_critic_forward(x, packed):
    """PPO actor-critic forward via a batch-tiled Pallas kernel.

    Args:
      x: [batch, obs_dim] float32 observations.
      packed: output of pack_params().

    Returns:
      (action_mean [B, act_dim], action_std [B, act_dim], value [B, 1])
    """
    batch, obs_dim = x.shape
    hidden = packed["hidden"]
    act_dim = packed["act_dim"]
    head_rows = packed["head_rows"]

    # Batch tiling: small -> single exact block; mid -> 2 lane-aligned blocks
    # (both v7x TCs get work); huge -> 2048-row tiles. Partial last blocks are
    # fine: rows/columns are independent and OOB writebacks are discarded.
    if batch <= _SPLIT_B:
        tb = batch
    elif batch <= 2 * _MAX_TILE_B:
        tb = _round_up(pl.cdiv(batch, 2), _LANE)
    else:
        tb = _MAX_TILE_B
    grid = (pl.cdiv(batch, tb),)

    tiled_x = pl.BlockSpec((tb, obs_dim), lambda i: (i, 0))        # streamed
    const = lambda shape: pl.BlockSpec(shape, lambda i: (0, 0))    # resident
    out_spec = pl.BlockSpec((head_rows, tb), lambda i: (0, i))     # transposed out

    # Advisory cost estimate so XLA can overlap the surrounding slice/transpose.
    flops = 2 * batch * hidden * (obs_dim + hidden + head_rows)
    bytes_accessed = (batch * obs_dim * 4                       # x read (f32)
                      + head_rows * batch * 4                   # out write (f32)
                      + (obs_dim * hidden + hidden * hidden
                         + head_rows * hidden) * 2              # bf16 weights
                      + (2 * hidden + head_rows) * 4)           # f32 biases
    cost = pl.CostEstimate(flops=flops, transcendentals=0,
                           bytes_accessed=bytes_accessed)

    out = pl.pallas_call(
        _ppo_kernel,
        out_shape=jax.ShapeDtypeStruct((head_rows, batch), jnp.float32),
        grid=grid,
        in_specs=[
            tiled_x,                               # x tile
            const((obs_dim, hidden)),              # w1
            const((1, hidden)),                    # b1
            const((hidden, hidden)),               # w2
            const((1, hidden)),                    # b2
            const((head_rows, hidden)),            # fused/transposed head weight
            const((head_rows, 1)),                 # fused head bias
        ],
        out_specs=out_spec,
        compiler_params=pltpu.CompilerParams(
            dimension_semantics=("parallel",)),
        cost_estimate=cost,
    )(x.astype(jnp.float32), packed["w1"], packed["b1"], packed["w2"],
      packed["b2"], packed["wh"], packed["bh"])

    mean = out[:act_dim, :].T                       # [batch, act_dim]
    value = out[act_dim:act_dim + 1, :].T           # [batch, 1]
    std = jnp.broadcast_to(packed["std"], mean.shape)
    # TODO(synk): torch.distributions.Normal has no array equivalent; we return
    # its sufficient statistics (mean, std) instead of a distribution object.
    return mean, std, value


def init_params(key, obs_dim, act_dim, hidden=128):
    """Deterministic parameter init mimicking nn.Linear's U(-1/sqrt(fan_in), ...)."""
    ks = jax.random.split(key, 8)

    def linear(kw, kb, fan_in, fan_out):
        bound = 1.0 / jnp.sqrt(fan_in)
        w = jax.random.uniform(kw, (fan_in, fan_out), jnp.float32, -bound, bound)
        b = jax.random.uniform(kb, (1, fan_out), jnp.float32, -bound, bound)
        return w, b

    w1, b1 = linear(ks[0], ks[1], obs_dim, hidden)
    w2, b2 = linear(ks[2], ks[3], hidden, hidden)
    wm, bm = linear(ks[4], ks[5], hidden, act_dim)
    wv, bv = linear(ks[6], ks[7], hidden, 1)
    logstd = jnp.zeros((1, act_dim), jnp.float32)   # torch.zeros(act_dim)

    return dict(w1=w1, b1=b1, w2=w2, b2=b2, wm=wm, bm=bm, wv=wv, bv=bv,
                logstd=logstd)


def _reference_forward(x, p, matmul_dtype=jnp.bfloat16):
    """Plain-JAX reference with matching precision (bf16 matmul, f32 accum)."""
    xc = x.astype(matmul_dtype)
    h1 = jnp.dot(xc, p["w1"].astype(matmul_dtype),
                 preferred_element_type=jnp.float32) + p["b1"]
    h1 = jnp.maximum(h1, 0.0)
    h2 = jnp.dot(h1.astype(matmul_dtype), p["w2"].astype(matmul_dtype),
                 preferred_element_type=jnp.float32) + p["b2"]
    h2 = jnp.maximum(h2, 0.0)
    mean = jnp.dot(h2.astype(matmul_dtype), p["wm"].astype(matmul_dtype),
                   preferred_element_type=jnp.float32) + p["bm"]
    value = jnp.dot(h2.astype(matmul_dtype), p["wv"].astype(matmul_dtype),
                    preferred_element_type=jnp.float32) + p["bv"]
    std = jnp.broadcast_to(jnp.exp(p["logstd"]), mean.shape)
    return mean, std, value


if __name__ == "__main__":
    batch, obs_dim, act_dim = 2, 16, 4

    key = jax.random.PRNGKey(0)
    k_params, k_x = jax.random.split(key)
    params = init_params(k_params, obs_dim, act_dim)
    packed = pack_params(params)                        # one-time weight packing
    x = jax.random.normal(k_x, (batch, obs_dim), jnp.float32)

    mean, std, value = jax.block_until_ready(
        ppo_actor_critic_forward(x, packed))

    ref_mean, ref_std, ref_value = _reference_forward(x, params)
    assert mean.shape == (batch, act_dim)
    assert std.shape == (batch, act_dim)
    assert value.shape == (batch, 1)
    assert jnp.allclose(mean, ref_mean, atol=1e-3, rtol=1e-3)
    assert jnp.allclose(std, ref_std, atol=1e-5)
    assert jnp.allclose(value, ref_value, atol=1e-3, rtol=1e-3)

    print("KERNEL_OK")
</pallas_src>

<mosaic_0001>
module attributes {stable_mosaic.version = 11 : i64} {
  func.func @_ppo_kernel(%arg0: i32, %arg1: memref<2x16xf32, #tpu.memory_space<vmem>>, %arg2: memref<16x128xbf16, #tpu.memory_space<vmem>>, %arg3: memref<1x128xf32, #tpu.memory_space<vmem>>, %arg4: memref<128x128xbf16, #tpu.memory_space<vmem>>, %arg5: memref<1x128xf32, #tpu.memory_space<vmem>>, %arg6: memref<8x128xbf16, #tpu.memory_space<vmem>>, %arg7: memref<8x1xf32, #tpu.memory_space<vmem>>, %arg8: memref<8x2xf32, #tpu.memory_space<vmem>>) attributes {dimension_semantics = [#tpu.dimension_semantics<parallel>], iteration_bounds = array<i64: 1>, scalar_prefetch = 0 : i64, scratch_operands = 0 : i64, tpu.core_type = #tpu.core_type<tc>, window_params = [{transform_indices = @transform_0, window_bounds = array<i64: 2, 16>}, {pipeline_mode = #tpu.pipeline_mode<synchronous>, transform_indices = @transform_1, window_bounds = array<i64: 16, 128>}, {pipeline_mode = #tpu.pipeline_mode<synchronous>, transform_indices = @transform_2, window_bounds = array<i64: 1, 128>}, {pipeline_mode = #tpu.pipeline_mode<synchronous>, transform_indices = @transform_3, window_bounds = array<i64: 128, 128>}, {pipeline_mode = #tpu.pipeline_mode<synchronous>, transform_indices = @transform_4, window_bounds = array<i64: 1, 128>}, {pipeline_mode = #tpu.pipeline_mode<synchronous>, transform_indices = @transform_5, window_bounds = array<i64: 8, 128>}, {pipeline_mode = #tpu.pipeline_mode<synchronous>, transform_indices = @transform_6, window_bounds = array<i64: 8, 1>}, {transform_indices = @transform_7, window_bounds = array<i64: 8, 2>}]} {
    %c0 = arith.constant 0 : index
    %c0_0 = arith.constant 0 : index
    %0 = vector.load %arg1[%c0, %c0_0] : memref<2x16xf32, #tpu.memory_space<vmem>>, vector<2x16xf32>
    %1 = arith.truncf %0 : vector<2x16xf32> to vector<2x16xbf16>
    %c0_1 = arith.constant 0 : index
    %c0_2 = arith.constant 0 : index
    %2 = vector.load %arg2[%c0_1, %c0_2] : memref<16x128xbf16, #tpu.memory_space<vmem>>, vector<16x128xbf16>
    %cst = arith.constant dense<0.000000e+00> : vector<2x128xf32>
    %3 = tpu.matmul %1, %2, %cst {dimension_numbers = #tpu.dot_dimension_numbers<[1], [0], [0], [1], [0, 0, 1, 1], [], []>} : vector<2x16xbf16>, vector<16x128xbf16>, vector<2x128xf32> -> vector<2x128xf32>
    %c0_3 = arith.constant 0 : index
    %c0_4 = arith.constant 0 : index
    %4 = vector.load %arg3[%c0_3, %c0_4] : memref<1x128xf32, #tpu.memory_space<vmem>>, vector<1x128xf32>
    %5 = vector.broadcast %4 : vector<1x128xf32> to vector<2x128xf32>
    %6 = arith.addf %3, %5 : vector<2x128xf32>
    %cst_5 = arith.constant 0.000000e+00 : f32
    %7 = vector.broadcast %cst_5 : f32 to vector<2x128xf32>
    %8 = arith.maximumf %6, %7 : vector<2x128xf32>
    %9 = arith.truncf %8 : vector<2x128xf32> to vector<2x128xbf16>
    %c0_6 = arith.constant 0 : index
    %c0_7 = arith.constant 0 : index
    %10 = vector.load %arg4[%c0_6, %c0_7] : memref<128x128xbf16, #tpu.memory_space<vmem>>, vector<128x128xbf16>
    %cst_8 = arith.constant dense<0.000000e+00> : vector<2x128xf32>
    %11 = tpu.matmul %9, %10, %cst_8 {dimension_numbers = #tpu.dot_dimension_numbers<[1], [0], [0], [1], [0, 0, 1, 1], [], []>} : vector<2x128xbf16>, vector<128x128xbf16>, vector<2x128xf32> -> vector<2x128xf32>
    %c0_9 = arith.constant 0 : index
    %c0_10 = arith.constant 0 : index
    %12 = vector.load %arg5[%c0_9, %c0_10] : memref<1x128xf32, #tpu.memory_space<vmem>>, vector<1x128xf32>
    %13 = vector.broadcast %12 : vector<1x128xf32> to vector<2x128xf32>
    %14 = arith.addf %11, %13 : vector<2x128xf32>
    %cst_11 = arith.constant 0.000000e+00 : f32
    %15 = vector.broadcast %cst_11 : f32 to vector<2x128xf32>
    %16 = arith.maximumf %14, %15 : vector<2x128xf32>
    %c0_12 = arith.constant 0 : index
    %c0_13 = arith.constant 0 : index
    %17 = vector.load %arg6[%c0_12, %c0_13] : memref<8x128xbf16, #tpu.memory_space<vmem>>, vector<8x128xbf16>
    %18 = arith.truncf %16 : vector<2x128xf32> to vector<2x128xbf16>
    %cst_14 = arith.constant dense<0.000000e+00> : vector<8x2xf32>
    %19 = tpu.matmul %17, %18, %cst_14 {dimension_numbers = #tpu.dot_dimension_numbers<[1], [1], [0], [0], [0, 0, 1, 0], [], []>} : vector<8x128xbf16>, vector<2x128xbf16>, vector<8x2xf32> -> vector<8x2xf32>
    %c0_15 = arith.constant 0 : index
    %c0_16 = arith.constant 0 : index
    %20 = vector.load %arg7[%c0_15, %c0_16] : memref<8x1xf32, #tpu.memory_space<vmem>>, vector<8x1xf32>
    %21 = vector.broadcast %20 : vector<8x1xf32> to vector<8x2xf32>
    %22 = arith.addf %19, %21 : vector<8x2xf32>
    %c0_17 = arith.constant 0 : index
    %c0_18 = arith.constant 0 : index
    %23 = vector.load %arg8[%c0_17, %c0_18] : memref<8x2xf32, #tpu.memory_space<vmem>>, vector<8x2xf32>
    tpu.vector_store %arg8[%c0_17, %c0_18], %22 {strides = array<i32>} : memref<8x2xf32, #tpu.memory_space<vmem>>, vector<8x2xf32>,
    return
  }
  func.func @transform_0(%arg0: i32) -> (i32, i32) {
    %c0_i32 = arith.constant 0 : i32
    %c0_i32_0 = arith.constant 0 : i32
    return %arg0, %c0_i32 : i32, i32
  }
  func.func @transform_1(%arg0: i32) -> (i32, i32) {
    %c0_i32 = arith.constant 0 : i32
    %c0_i32_0 = arith.constant 0 : i32
    %c0_i32_1 = arith.constant 0 : i32
    return %c0_i32, %c0_i32_0 : i32, i32
  }
  func.func @transform_2(%arg0: i32) -> (i32, i32) {
    %c0_i32 = arith.constant 0 : i32
    %c0_i32_0 = arith.constant 0 : i32
    %c0_i32_1 = arith.constant 0 : i32
    return %c0_i32, %c0_i32_0 : i32, i32
  }
  func.func @transform_3(%arg0: i32) -> (i32, i32) {
    %c0_i32 = arith.constant 0 : i32
    %c0_i32_0 = arith.constant 0 : i32
    %c0_i32_1 = arith.constant 0 : i32
    return %c0_i32, %c0_i32_0 : i32, i32
  }
  func.func @transform_4(%arg0: i32) -> (i32, i32) {
    %c0_i32 = arith.constant 0 : i32
    %c0_i32_0 = arith.constant 0 : i32
    %c0_i32_1 = arith.constant 0 : i32
    return %c0_i32, %c0_i32_0 : i32, i32
  }
  func.func @transform_5(%arg0: i32) -> (i32, i32) {
    %c0_i32 = arith.constant 0 : i32
    %c0_i32_0 = arith.constant 0 : i32
    %c0_i32_1 = arith.constant 0 : i32
    return %c0_i32, %c0_i32_0 : i32, i32
  }
  func.func @transform_6(%arg0: i32) -> (i32, i32) {
    %c0_i32 = arith.constant 0 : i32
    %c0_i32_0 = arith.constant 0 : i32
    %c0_i32_1 = arith.constant 0 : i32
    return %c0_i32, %c0_i32_0 : i32, i32
  }
  func.func @transform_7(%arg0: i32) -> (i32, i32) {
    %c0_i32 = arith.constant 0 : i32
    %c0_i32_0 = arith.constant 0 : i32
    return %c0_i32, %arg0 : i32, i32
  }
}

</mosaic_0001>

<llo_original>
// kernel: tpu_custom_call.1
$region0: #{tpu_custom_call.1}
  #allocation0 [shape = 'u32[]', space=smem, size = 0x4, offset = 0x4, fixed_abs, tag = 'smem constant byte address 0x4 - core index']
  #allocation1 [shape = 'u32[144,128]{1,0:T(1,128)}', space=vmem, size = 0x12000, scoped, tag = 'internal scratch']
  %s0 = inlined_call_operand.hbm [shape: f32[2,16], index: 0, kind: input, shape index: {}]
  %s1 = inlined_call_operand.vmem [shape: bf16[16,128], index: 1, kind: input, shape index: {}]
  %s2 = inlined_call_operand.hbm [shape: f32[1,128], index: 2, kind: input, shape index: {}]
  %s3 = inlined_call_operand.hbm [shape: bf16[128,128], index: 3, kind: input, shape index: {}]
  %s4 = inlined_call_operand.vmem [shape: f32[1,128], index: 4, kind: input, shape index: {}]
  %s5 = inlined_call_operand.vmem [shape: bf16[8,128], index: 5, kind: input, shape index: {}]
  %s6 = inlined_call_operand.vmem [shape: f32[8,1], index: 6, kind: input, shape index: {}]
  %s7 = inlined_call_operand.vmem [shape: f32[8,2], index: 7, kind: output, shape index: {}]
  %s8 = sld [smem:[#allocation0]]
  $region50: #{tpu_custom_call.1} parent=0
    _
  %s10 = ssub.s32 1, %s8
  %s11 = scalar_select 0, %s10, %s8
  $region1: #{tpu_custom_call.1} parent=0
    #allocation2 [shape = 'u8[1024]{0}', space=vmem, size = 0x400, scoped, tag = 'input window, operand 0, single buffered']
    #allocation3 [shape = 's32[1]{0}', space=sflag, size = 0x4, scoped, tag = 'scoped memory for tpu_custom_call.1']
    #allocation4 [shape = 'u8[512]{0}', space=vmem, size = 0x400, scoped, tag = 'input window, operand 2, single buffered']
    #allocation5 [shape = 's32[1]{0}', space=sflag, size = 0x4, scoped, tag = 'scoped memory for tpu_custom_call.1']
    #allocation6 [shape = 'u8[32768]{0}', space=vmem, size = 0x8000, scoped, tag = 'input window, operand 3, single buffered']
    %12 = vsyncpa [#allocation3], 0
    %13 = vsyncpa [#allocation5], 0
    // Predicated region
    $region2: #{tpu_custom_call.1} parent=1 // pred_check
      _
    $region3: #{tpu_custom_call.1} parent=1 // pred_check_branch
      %15 = sbr.rel (0) target = $region5
    $region4: #{tpu_custom_call.1} parent=1 // pred_region
      %s17 = ssub.s32 32, 32
      %18 = vsyncadd [#allocation3], %s17
      %s20 = sshll.u32 [#allocation2], 4
      %s21 = int_to_ptr.vmem [resolvable:$true] %s20
      %23 = dma.hbm_to_vmem [thread:$0]  %s0, 32, %s21, [#allocation3]
    $region5: #{tpu_custom_call.1} parent=1 // pred_fallthru
      _
    // Predicated region
    $region6: #{tpu_custom_call.1} parent=1 // pred_check
      _
    $region7: #{tpu_custom_call.1} parent=1 // pred_check_branch
      %25 = sbr.rel (0) target = $region9
    $region8: #{tpu_custom_call.1} parent=1 // pred_region
      _
    $region9: #{tpu_custom_call.1} parent=1 // pred_fallthru
      _
    // Predicated region
    $region10: #{tpu_custom_call.1} parent=1 // pred_check
      _
    $region11: #{tpu_custom_call.1} parent=1 // pred_check_branch
      %27 = sbr.rel (0) target = $region13
    $region12: #{tpu_custom_call.1} parent=1 // pred_region
      %s29 = ssub.s32 16, 16
      %30 = vsyncadd [#allocation5], %s29
      %s32 = sshll.u32 [#allocation4], 4
      %s33 = int_to_ptr.vmem [resolvable:$true] %s32
      %35 = dma.hbm_to_vmem [thread:$0]  %s2, 16, %s33, [#allocation5]
    $region13: #{tpu_custom_call.1} parent=1 // pred_fallthru
      _
    // Predicated region
    $region14: #{tpu_custom_call.1} parent=1 // pred_check
      _
    $region15: #{tpu_custom_call.1} parent=1 // pred_check_branch
      %37 = sbr.rel (0) target = $region17
    $region16: #{tpu_custom_call.1} parent=1 // pred_region
      %s39 = ssub.s32 1024, 1024
      %40 = vsyncadd [#allocation5], %s39
      %s41 = sshll.u32 [#allocation6], 4
      %s42 = int_to_ptr.vmem [resolvable:$true] %s41
      %47 = dma.hbm_to_vmem [thread:$0]  %s3, 1024, %s42, [#allocation5], 64, 64, 4
    $region17: #{tpu_custom_call.1} parent=1 // pred_fallthru
      _
    // Predicated region
    $region18: #{tpu_custom_call.1} parent=1 // pred_check
      _
    $region19: #{tpu_custom_call.1} parent=1 // pred_check_branch
      %49 = sbr.rel (0) target = $region21
    $region20: #{tpu_custom_call.1} parent=1 // pred_region
      _
    $region21: #{tpu_custom_call.1} parent=1 // pred_fallthru
      _
    // Predicated region
    $region22: #{tpu_custom_call.1} parent=1 // pred_check
      _
    $region23: #{tpu_custom_call.1} parent=1 // pred_check_branch
      %51 = sbr.rel (0) target = $region25
    $region24: #{tpu_custom_call.1} parent=1 // pred_region
      _
    $region25: #{tpu_custom_call.1} parent=1 // pred_fallthru
      _
    // Predicated region
    $region26: #{tpu_custom_call.1} parent=1 // pred_check
      _
    $region27: #{tpu_custom_call.1} parent=1 // pred_check_branch
      %53 = sbr.rel (0) target = $region29
    $region28: #{tpu_custom_call.1} parent=1 // pred_region
      _
    $region29: #{tpu_custom_call.1} parent=1 // pred_fallthru
      _
    // Predicated region
    $region30: #{tpu_custom_call.1} parent=1 // pred_check
      _
    $region31: #{tpu_custom_call.1} parent=1 // pred_check_branch
      %55 = sbr.rel (0) target = $region33
    $region32: #{tpu_custom_call.1} parent=1 // pred_region
      %56 = dma.done [#allocation3], 32
    $region33: #{tpu_custom_call.1} parent=1 // pred_fallthru
      _
    // Predicated region
    $region34: #{tpu_custom_call.1} parent=1 // pred_check
      _
    $region35: #{tpu_custom_call.1} parent=1 // pred_check_branch
      %58 = sbr.rel (0) target = $region37
    $region36: #{tpu_custom_call.1} parent=1 // pred_region
      %59 = dma.done [#allocation5], 16
    $region37: #{tpu_custom_call.1} parent=1 // pred_fallthru
      _
    // Predicated region
    $region38: #{tpu_custom_call.1} parent=1 // pred_check
      _
    $region39: #{tpu_custom_call.1} parent=1 // pred_check_branch
      %61 = sbr.rel (0) target = $region41
    $region40: #{tpu_custom_call.1} parent=1 // pred_region
      %62 = dma.done [#allocation5], 1024
    $region41: #{tpu_custom_call.1} parent=1 // pred_fallthru
      _
    %v64 = vld [vmem:[#allocation2] sm:$0x3]
    %v65 = vpack.c.bf16 %v64, %v64
    %v66 = vld [vmem:[%s1] sm:$0xf]
    %v67 = vld [vmem:[%s1 + $0x4] sm:$0xf]
    %v68 = vld [vmem:[#allocation4] sm:$0x1]
    %v70 = vlaneseq
    %v71 = vshrl.u32 %v70, 7
    %v72 = vsub.s32 0, %v71
    %v73 = vrot.slane %v68, %v72
    %v77 = vunpack.c.l.b16 %v66
    %v78 = vunpack.c.l.b16 %v67
    %v79 = vpack.c.b16 %v78, %v77
    %vm81 = vcmask 130048
    %v83 = vsel %vm81, %v65, 0
    %85 = vmatprep.subr.bf16.mxu0 0
    %86 = vmatpush1.bf16.msra.mxu0 0
    %87 = vmatprep.subr.bf16.mxu0 0
    %88 = vmatpush1.bf16.msra.mxu0 0
    %89 = vmatprep.subr.bf16.mxu0 0
    %90 = vmatpush1.bf16.msra.mxu0 0
    %91 = vmatprep.subr.bf16.mxu0 0
    %92 = vmatpush1.bf16.msra.mxu0 0
    %93 = vmatprep.subr.bf16.mxu0 0
    %94 = vmatpush1.bf16.msra.mxu0 0
    %95 = vmatprep.subr.bf16.mxu0 0
    %96 = vmatpush1.bf16.msra.mxu0 0
    %97 = vmatprep.subr.bf16.mxu0 0
    %98 = vmatpush1.bf16.msra.mxu0 0
    %99 = vmatprep.subr.bf16.mxu0 0
    %100 = vmatpush1.bf16.msra.mxu0 %v79
    %101 = vmatprep.subr.bf16.mxu0 0
    %102 = vmatpush2.bf16.msra.mxu0 0
    %103 = vmatprep.subr.bf16.mxu0 0
    %104 = vmatpush2.bf16.msra.mxu0 0
    %105 = vmatprep.subr.bf16.mxu0 0
    %106 = vmatpush2.bf16.msra.mxu0 0
    %107 = vmatprep.subr.bf16.mxu0 0
    %108 = vmatpush2.bf16.msra.mxu0 0
    %109 = vmatprep.subr.bf16.mxu0 0
    %110 = vmatpush2.bf16.msra.mxu0 0
    %111 = vmatprep.subr.bf16.mxu0 0
    %112 = vmatpush2.bf16.msra.mxu0 0
    %113 = vmatprep.subr.bf16.mxu0 0
    %114 = vmatpush2.bf16.msra.mxu0 0
    %115 = vmatprep.subr.bf16.mxu0 0
    %116 = vmatpush2.bf16.msra.mxu0 0
    %117 = vmatprep.mubr.bf16.mxu0 0
    %118 = vmatmul.mubr.bf16.gmra.mxu0 %v83
    %v119 = vpop.f32.mrf.mxu0
    %v120 = vadd.f32 %v73, %v119
    %v121 = vpop.f32.mrf.mxu0
    %v122 = vpop.f32.mrf.mxu0
    %v123 = vpop.f32.mrf.mxu0
    %124 = vdwg.mxu0
    %v125 = vmax.f32 %v120, 0.0
    %v126 = vpack.c.bf16 %v125, %v125
    %v127 = vld [vmem:[#allocation6] sm:$0xf]
    %v128 = vld [vmem:[#allocation6 + $0x4] sm:$0xf]
    %v129 = vld [vmem:[#allocation6 + $0x8] sm:$0xf]
    %v130 = vld [vmem:[#allocation6 + $0xc] sm:$0xf]
    %v131 = vld [vmem:[#allocation6 + $0x10] sm:$0xf]
    %v132 = vld [vmem:[#allocation6 + $0x14] sm:$0xf]
    %v133 = vld [vmem:[#allocation6 + $0x18] sm:$0xf]
    %v134 = vld [vmem:[#allocation6 + $0x1c] sm:$0xf]
    %v135 = vld [vmem:[#allocation6 + $0x20] sm:$0xf]
    %v136 = vld [vmem:[#allocation6 + $0x24] sm:$0xf]
    %v137 = vld [vmem:[#allocation6 + $0x28] sm:$0xf]
    %v138 = vld [vmem:[#allocation6 + $0x2c] sm:$0xf]
    %v139 = vld [vmem:[#allocation6 + $0x30] sm:$0xf]
    %v140 = vld [vmem:[#allocation6 + $0x34] sm:$0xf]
    %v141 = vld [vmem:[#allocation6 + $0x38] sm:$0xf]
    %v142 = vld [vmem:[#allocation6 + $0x3c] sm:$0xf]
    %v143 = vld [vmem:[%s4] sm:$0x1]
    %v145 = vlaneseq
    %v146 = vshrl.u32 %v145, 7
    %v147 = vsub.s32 0, %v146
    %v148 = vrot.slane %v143, %v147
    %v166 = vunpack.c.l.b16 %v127
    %v167 = vunpack.c.l.b16 %v128
    %v168 = vunpack.c.l.b16 %v129
    %v169 = vunpack.c.l.b16 %v130
    %v170 = vunpack.c.l.b16 %v131
    %v171 = vunpack.c.l.b16 %v132
    %v172 = vunpack.c.l.b16 %v133
    %v173 = vunpack.c.l.b16 %v134
    %v174 = vunpack.c.l.b16 %v135
    %v175 = vunpack.c.l.b16 %v136
    %v176 = vunpack.c.l.b16 %v137
    %v177 = vunpack.c.l.b16 %v138
    %v178 = vunpack.c.l.b16 %v139
    %v179 = vunpack.c.l.b16 %v140
    %v180 = vunpack.c.l.b16 %v141
    %v181 = vunpack.c.l.b16 %v142
    %v182 = vpack.c.b16 %v167, %v166
    %v183 = vpack.c.b16 %v169, %v168
    %v184 = vpack.c.b16 %v171, %v170
    %v185 = vpack.c.b16 %v173, %v172
    %v186 = vpack.c.b16 %v175, %v174
    %v187 = vpack.c.b16 %v177, %v176
    %v188 = vpack.c.b16 %v179, %v178
    %v189 = vpack.c.b16 %v181, %v180
    %198 = vmatprep.subr.bf16.mxu0 0
    %199 = vmatpush1.bf16.msra.mxu0 %v189
    %200 = vmatprep.subr.bf16.mxu0 0
    %201 = vmatpush1.bf16.msra.mxu0 %v188
    %202 = vmatprep.subr.bf16.mxu0 0
    %203 = vmatpush1.bf16.msra.mxu0 %v187
    %204 = vmatprep.subr.bf16.mxu0 0
    %205 = vmatpush1.bf16.msra.mxu0 %v186
    %206 = vmatprep.subr.bf16.mxu0 0
    %207 = vmatpush1.bf16.msra.mxu0 %v185
    %208 = vmatprep.subr.bf16.mxu0 0
    %209 = vmatpush1.bf16.msra.mxu0 %v184
    %210 = vmatprep.subr.bf16.mxu0 0
    %211 = vmatpush1.bf16.msra.mxu0 %v183
    %212 = vmatprep.subr.bf16.mxu0 0
    %213 = vmatpush1.bf16.msra.mxu0 %v182
    %214 = vmatprep.subr.bf16.mxu0 0
    %215 = vmatpush2.bf16.msra.mxu0 0
    %216 = vmatprep.subr.bf16.mxu0 0
    %217 = vmatpush2.bf16.msra.mxu0 0
    %218 = vmatprep.subr.bf16.mxu0 0
    %219 = vmatpush2.bf16.msra.mxu0 0
    %220 = vmatprep.subr.bf16.mxu0 0
    %221 = vmatpush2.bf16.msra.mxu0 0
    %222 = vmatprep.subr.bf16.mxu0 0
    %223 = vmatpush2.bf16.msra.mxu0 0
    %224 = vmatprep.subr.bf16.mxu0 0
    %225 = vmatpush2.bf16.msra.mxu0 0
    %226 = vmatprep.subr.bf16.mxu0 0
    %227 = vmatpush2.bf16.msra.mxu0 0
    %228 = vmatprep.subr.bf16.mxu0 0
    %229 = vmatpush2.bf16.msra.mxu0 0
    %230 = vmatprep.mubr.bf16.mxu0 0
    %231 = vmatmul.mubr.bf16.gmra.mxu0 %v126
    %v232 = vpop.f32.mrf.mxu0
    %v233 = vadd.f32 %v148, %v232
    %v234 = vpop.f32.mrf.mxu0
    %v235 = vpop.f32.mrf.mxu0
    %v236 = vpop.f32.mrf.mxu0
    %237 = vdwg.mxu0
    %v238 = vmax.f32 %v233, 0.0
    %v239 = vld [vmem:[%s5] sm:$0xf]
    %v240 = vpack.c.bf16 %v238, %v238
    %v241 = vld [vmem:[%s6] sm:$0xff]
    %243 = vset.pattern.permute.xlu0 0
    %244 = vperm.xlu0 %243, %v241
    %v245 = vpop.permute.xlu0 %244
    %247 = vmatprep.subr.bf16.mxu0 0
    %248 = vmatpush1.bf16.xpose.msra.mxu0 0
    %249 = vmatprep.subr.bf16.mxu0 0
    %250 = vmatpush1.bf16.xpose.msra.mxu0 0
    %251 = vmatprep.subr.bf16.mxu0 0
    %252 = vmatpush1.bf16.xpose.msra.mxu0 0
    %253 = vmatprep.subr.bf16.mxu0 0
    %254 = vmatpush1.bf16.xpose.msra.mxu0 0
    %255 = vmatprep.subr.bf16.mxu0 0
    %256 = vmatpush1.bf16.xpose.msra.mxu0 0
    %257 = vmatprep.subr.bf16.mxu0 0
    %258 = vmatpush1.bf16.xpose.msra.mxu0 0
    %259 = vmatprep.subr.bf16.mxu0 0
    %260 = vmatpush1.bf16.xpose.msra.mxu0 0
    %261 = vmatprep.subr.bf16.mxu0 0
    %262 = vmatpush1.bf16.xpose.msra.mxu0 %v240
    %263 = vmatprep.subr.bf16.mxu0 0
    %264 = vmatpush2.bf16.xpose.msra.mxu0 0
    %265 = vmatprep.subr.bf16.mxu0 0
    %266 = vmatpush2.bf16.xpose.msra.mxu0 0
    %267 = vmatprep.subr.bf16.mxu0 0
    %268 = vmatpush2.bf16.xpose.msra.mxu0 0
    %269 = vmatprep.subr.bf16.mxu0 0
    %270 = vmatpush2.bf16.xpose.msra.mxu0 0
    %271 = vmatprep.subr.bf16.mxu0 0
    %272 = vmatpush2.bf16.xpose.msra.mxu0 0
    %273 = vmatprep.subr.bf16.mxu0 0
    %274 = vmatpush2.bf16.xpose.msra.mxu0 0
    %275 = vmatprep.subr.bf16.mxu0 0
    %276 = vmatpush2.bf16.xpose.msra.mxu0 0
    %277 = vmatprep.subr.bf16.mxu0 0
    %278 = vmatpush2.bf16.xpose.msra.mxu0 0
    %279 = vmatprep.mubr.bf16.mxu0 0
    %280 = vmatmul.mubr.bf16.gmra.mxu0 %v239
    %v281 = vpop.f32.mrf.mxu0
    %v282 = vadd.f32 %v245, %v281
    %v283 = vpop.f32.mrf.mxu0
    %v284 = vpop.f32.mrf.mxu0
    %v285 = vpop.f32.mrf.mxu0
    %286 = vdwg.mxu0
    %vm287 = vcmask 15360
    %288 = vst.msk [vmem:[%s7] sm:$0xff] %vm287, %v282
    // Predicated region
    $region42: #{tpu_custom_call.1} parent=1 // pred_check
      _
    $region43: #{tpu_custom_call.1} parent=1 // pred_check_branch
      %290 = sbr.rel (0) target = $region45
    $region44: #{tpu_custom_call.1} parent=1 // pred_region
      _
    $region45: #{tpu_custom_call.1} parent=1 // pred_fallthru
      _
    // Predicated region
    $region46: #{tpu_custom_call.1} parent=1 // pred_check
      _
    $region47: #{tpu_custom_call.1} parent=1 // pred_check_branch
      %292 = sbr.rel (0) target = $region49
    $region48: #{tpu_custom_call.1} parent=1 // pred_region
      _
    $region49: #{tpu_custom_call.1} parent=1 // pred_fallthru
      _
    %293 = vsyncpa [#allocation3], 1
    %294 = vsyncpa [#allocation5], 1

</llo_original>
